<compile_context>
chip_gen: v5e
topology: v5e:2x2
jax: 0.10.0
libtpu: 0.0.40
codegen_flags: <defaults>
</compile_context>

<pallas_src>
import jax
import jax.numpy as jnp
from jax import lax
from jax.experimental import pallas as pl
from jax.experimental.pallas import tpu as pltpu

INPUT_DIM = 8       # california housing has 8 features
OUTPUT_DIM = 1
DIMS = (INPUT_DIM, 64, 32, 32, 16, OUTPUT_DIM)
LAYERS = tuple(zip(DIMS[:-1], DIMS[1:]))    # ((8,64),(64,32),(32,32),(32,16),(16,1))

LANE = 128
MAX_TILE = 4096     # batch rows (lanes) per grid step; multiple of 128


def _round_up(x, m):
    return ((x + m - 1) // m) * m


# ---- packed weight-slab layout ---------------------------------------------
# For layer l (out_l rows, rounded up to 8 sublanes so every slice is aligned):
#   slab[row_off_l : row_off_l + out_l, 0:in_l]   = W_l^T     (out_l, in_l)
#   slab[row_off_l : row_off_l + out_l, BIAS_COL] = b_l       (out_l,)
_offs = []
_acc = 0
for _din, _dout in LAYERS:
    _offs.append(_acc)
    _acc += _round_up(_dout, 8)
ROW_OFFS = tuple(_offs)
SLAB_ROWS = _acc                          # 64 + 32 + 32 + 16 + 8 = 152
BIAS_COL = max(d for d, _ in LAYERS)      # 64 -> a free column for every layer
SLAB_W = LANE                             # 128 lanes; ~78 KB, resident in VMEM


def mlp_kernel(x_ref, slab_ref, o_ref):
    # x_ref:    (TB, 8)            one batch tile
    # slab_ref: (SLAB_ROWS, 128)   all weights + biases (constant index_map)
    # o_ref:    (1, TB)            lane-major output slab (batch on lanes)
    x = x_ref[...]                                          # (TB, 8)

    def wb(layer):
        din, dout = LAYERS[layer]
        r0 = ROW_OFFS[layer]
        w_t = slab_ref[r0:r0 + dout, 0:din]                      # (dout, din) = W^T
        b = slab_ref[r0:r0 + dout, BIAS_COL:BIAS_COL + 1]        # (dout, 1)
        return w_t, b

    # Layer 1: fold the batch transpose into the contraction:
    #   (64, 8) . (TB, 8)^T -> (64, TB); batch sits on the lane axis from here on.
    w_t, b = wb(0)
    h = lax.dot_general(w_t, x, (((1,), (1,)), ((), ())),
                        preferred_element_type=jnp.float32) + b
    h = jnp.maximum(h, 0.0)

    # Layers 2..5: plain (dout, din) @ (din, TB), bias add, ReLU between layers.
    for layer in range(1, len(LAYERS)):
        w_t, b = wb(layer)
        h = jnp.dot(w_t, h, preferred_element_type=jnp.float32) + b
        if layer < len(LAYERS) - 1:
            h = jnp.maximum(h, 0.0)

    o_ref[...] = h.astype(o_ref.dtype)                      # (1, TB) lane-dense store


def pack_params(params):
    """Pack [(W (in,out), b (1,out)) x 5] into one (SLAB_ROWS, 128) f32 slab."""
    slab = jnp.zeros((SLAB_ROWS, SLAB_W), jnp.float32)
    for layer, (w, b) in enumerate(params):
        din, dout = LAYERS[layer]
        r0 = ROW_OFFS[layer]
        slab = slab.at[r0:r0 + dout, 0:din].set(jnp.asarray(w, jnp.float32).T)
        slab = slab.at[r0:r0 + dout, BIAS_COL].set(
            jnp.asarray(b, jnp.float32).reshape(dout))
    return slab


def _choose_tiling(batch):
    """Pick (tile, steps, padded_batch): lane-aligned, <= MAX_TILE per step,
    >= 2 steps when the batch has >= 2 lane groups (v7x megacore), minimal pad."""
    b_lanes = _round_up(batch, LANE)
    steps = pl.cdiv(b_lanes, MAX_TILE)
    if b_lanes >= 2 * LANE:
        steps = max(steps, 2)          # let the "parallel" axis feed both TCs on v7x
    tb = _round_up(pl.cdiv(b_lanes, steps), LANE)
    steps = pl.cdiv(b_lanes, tb)
    return tb, steps, steps * tb


def mlp_forward(x, slab):
    """x: (B, INPUT_DIM) float32; slab: output of pack_params(). Returns (B, 1)."""
    batch = x.shape[0]
    tb, steps, b_pad = _choose_tiling(batch)
    if b_pad != batch:
        x = jnp.pad(x, ((0, b_pad - batch), (0, 0)))

    flops = 2 * b_pad * sum(din * dout for din, dout in LAYERS)
    bytes_accessed = b_pad * (INPUT_DIM + OUTPUT_DIM) * 4 + SLAB_ROWS * SLAB_W * 4

    out = pl.pallas_call(
        mlp_kernel,
        out_shape=jax.ShapeDtypeStruct((1, b_pad), jnp.float32),
        grid=(steps,),
        in_specs=[
            pl.BlockSpec((tb, INPUT_DIM), lambda i: (i, 0)),       # batch tile
            pl.BlockSpec((SLAB_ROWS, SLAB_W), lambda i: (0, 0)),   # resident weights
        ],
        out_specs=pl.BlockSpec((1, tb), lambda i: (0, i)),         # lane-major output
        compiler_params=pltpu.CompilerParams(dimension_semantics=("parallel",)),
        cost_estimate=pl.CostEstimate(flops=flops, transcendentals=0,
                                      bytes_accessed=bytes_accessed),
    )(x, slab)

    # (1, b_pad) lane-major slab -> (batch, 1); padded columns are discarded.
    return out[0, :batch].reshape(batch, 1)


def init_params(key):
    """Deterministic init matching nn.Linear shapes (uniform +-1/sqrt(fan_in))."""
    params = []
    for din, dout in LAYERS:
        key, kw, kb = jax.random.split(key, 3)
        bound = 1.0 / (din ** 0.5)
        w = jax.random.uniform(kw, (din, dout), jnp.float32, -bound, bound)
        b = jax.random.uniform(kb, (1, dout), jnp.float32, -bound, bound)
        params.append((w, b))
    return params


def reference_forward(x, params):
    h = x
    for i, (w, b) in enumerate(params):
        h = jnp.dot(h, w, precision=lax.Precision.HIGHEST) + b
        if i < len(params) - 1:
            h = jnp.maximum(h, 0.0)
    return h


if __name__ == "__main__":
    key = jax.random.PRNGKey(0)
    kp, kx1, kx2 = jax.random.split(key, 3)
    params = init_params(kp)
    slab = pack_params(params)

    fwd = jax.jit(mlp_forward)

    # Small latency-path case: single grid step (tb = 128).
    batch1 = 8
    x1 = jax.random.normal(kx1, (batch1, INPUT_DIM), dtype=jnp.float32)
    out1 = jax.block_until_ready(fwd(x1, slab))
    ref1 = reference_forward(x1, params)
    assert out1.shape == (batch1, OUTPUT_DIM), out1.shape
    assert jnp.allclose(out1, ref1, atol=1e-4, rtol=1e-4), "mismatch vs reference (B=8)"

    # Larger case: 2 grid steps (megacore-friendly) + padding (600 -> 768 rows).
    batch2 = 600
    x2 = jax.random.normal(kx2, (batch2, INPUT_DIM), dtype=jnp.float32)
    out2 = jax.block_until_ready(fwd(x2, slab))
    ref2 = reference_forward(x2, params)
    assert out2.shape == (batch2, OUTPUT_DIM), out2.shape
    assert jnp.allclose(out2, ref2, atol=1e-4, rtol=1e-4), "mismatch vs reference (B=600)"

    print("KERNEL_OK")
</pallas_src>

<mosaic_0001>
module attributes {stable_mosaic.version = 11 : i64} {
  func.func @mlp_kernel(%arg0: i32, %arg1: memref<128x8xf32, #tpu.memory_space<vmem>>, %arg2: memref<152x128xf32, #tpu.memory_space<vmem>>, %arg3: memref<1x128xf32, #tpu.memory_space<vmem>>) attributes {dimension_semantics = [#tpu.dimension_semantics<parallel>], iteration_bounds = array<i64: 1>, scalar_prefetch = 0 : i64, scratch_operands = 0 : i64, tpu.core_type = #tpu.core_type<tc>, window_params = [{transform_indices = @transform_0, window_bounds = array<i64: 128, 8>}, {pipeline_mode = #tpu.pipeline_mode<synchronous>, transform_indices = @transform_1, window_bounds = array<i64: 152, 128>}, {transform_indices = @transform_2, window_bounds = array<i64: 1, 128>}]} {
    %c0 = arith.constant 0 : index
    %c0_0 = arith.constant 0 : index
    %0 = vector.load %arg1[%c0, %c0_0] : memref<128x8xf32, #tpu.memory_space<vmem>>, vector<128x8xf32>
    %c0_1 = arith.constant 0 : index
    %c0_2 = arith.constant 0 : index
    %1 = vector.load %arg2[%c0_1, %c0_2] : memref<152x128xf32, #tpu.memory_space<vmem>>, vector<64x8xf32>
    %c0_3 = arith.constant 0 : index
    %c64 = arith.constant 64 : index
    %2 = vector.load %arg2[%c0_3, %c64] : memref<152x128xf32, #tpu.memory_space<vmem>>, vector<64x1xf32>
    %cst = arith.constant dense<0.000000e+00> : vector<64x128xf32>
    %3 = tpu.matmul %1, %0, %cst {dimension_numbers = #tpu.dot_dimension_numbers<[1], [1], [0], [0], [0, 0, 1, 0], [], []>} : vector<64x8xf32>, vector<128x8xf32>, vector<64x128xf32> -> vector<64x128xf32>
    %4 = vector.broadcast %2 : vector<64x1xf32> to vector<64x128xf32>
    %5 = arith.addf %3, %4 : vector<64x128xf32>
    %cst_4 = arith.constant 0.000000e+00 : f32
    %6 = vector.broadcast %cst_4 : f32 to vector<64x128xf32>
    %7 = arith.maximumf %5, %6 : vector<64x128xf32>
    %c64_5 = arith.constant 64 : index
    %c0_6 = arith.constant 0 : index
    %8 = vector.load %arg2[%c64_5, %c0_6] : memref<152x128xf32, #tpu.memory_space<vmem>>, vector<32x64xf32>
    %c64_7 = arith.constant 64 : index
    %c64_8 = arith.constant 64 : index
    %9 = vector.load %arg2[%c64_7, %c64_8] : memref<152x128xf32, #tpu.memory_space<vmem>>, vector<32x1xf32>
    %cst_9 = arith.constant dense<0.000000e+00> : vector<32x128xf32>
    %10 = tpu.matmul %8, %7, %cst_9 {dimension_numbers = #tpu.dot_dimension_numbers<[1], [0], [0], [1], [0, 0, 1, 1], [], []>} : vector<32x64xf32>, vector<64x128xf32>, vector<32x128xf32> -> vector<32x128xf32>
    %11 = vector.broadcast %9 : vector<32x1xf32> to vector<32x128xf32>
    %12 = arith.addf %10, %11 : vector<32x128xf32>
    %cst_10 = arith.constant 0.000000e+00 : f32
    %13 = vector.broadcast %cst_10 : f32 to vector<32x128xf32>
    %14 = arith.maximumf %12, %13 : vector<32x128xf32>
    %c96 = arith.constant 96 : index
    %c0_11 = arith.constant 0 : index
    %15 = vector.load %arg2[%c96, %c0_11] : memref<152x128xf32, #tpu.memory_space<vmem>>, vector<32x32xf32>
    %c96_12 = arith.constant 96 : index
    %c64_13 = arith.constant 64 : index
    %16 = vector.load %arg2[%c96_12, %c64_13] : memref<152x128xf32, #tpu.memory_space<vmem>>, vector<32x1xf32>
    %cst_14 = arith.constant dense<0.000000e+00> : vector<32x128xf32>
    %17 = tpu.matmul %15, %14, %cst_14 {dimension_numbers = #tpu.dot_dimension_numbers<[1], [0], [0], [1], [0, 0, 1, 1], [], []>} : vector<32x32xf32>, vector<32x128xf32>, vector<32x128xf32> -> vector<32x128xf32>
    %18 = vector.broadcast %16 : vector<32x1xf32> to vector<32x128xf32>
    %19 = arith.addf %17, %18 : vector<32x128xf32>
    %cst_15 = arith.constant 0.000000e+00 : f32
    %20 = vector.broadcast %cst_15 : f32 to vector<32x128xf32>
    %21 = arith.maximumf %19, %20 : vector<32x128xf32>
    %c128 = arith.constant 128 : index
    %c0_16 = arith.constant 0 : index
    %22 = vector.load %arg2[%c128, %c0_16] : memref<152x128xf32, #tpu.memory_space<vmem>>, vector<16x32xf32>
    %c128_17 = arith.constant 128 : index
    %c64_18 = arith.constant 64 : index
    %23 = vector.load %arg2[%c128_17, %c64_18] : memref<152x128xf32, #tpu.memory_space<vmem>>, vector<16x1xf32>
    %cst_19 = arith.constant dense<0.000000e+00> : vector<16x128xf32>
    %24 = tpu.matmul %22, %21, %cst_19 {dimension_numbers = #tpu.dot_dimension_numbers<[1], [0], [0], [1], [0, 0, 1, 1], [], []>} : vector<16x32xf32>, vector<32x128xf32>, vector<16x128xf32> -> vector<16x128xf32>
    %25 = vector.broadcast %23 : vector<16x1xf32> to vector<16x128xf32>
    %26 = arith.addf %24, %25 : vector<16x128xf32>
    %cst_20 = arith.constant 0.000000e+00 : f32
    %27 = vector.broadcast %cst_20 : f32 to vector<16x128xf32>
    %28 = arith.maximumf %26, %27 : vector<16x128xf32>
    %c144 = arith.constant 144 : index
    %c0_21 = arith.constant 0 : index
    %29 = vector.load %arg2[%c144, %c0_21] : memref<152x128xf32, #tpu.memory_space<vmem>>, vector<1x16xf32>
    %c144_22 = arith.constant 144 : index
    %c64_23 = arith.constant 64 : index
    %30 = vector.load %arg2[%c144_22, %c64_23] : memref<152x128xf32, #tpu.memory_space<vmem>>, vector<1x1xf32>
    %cst_24 = arith.constant dense<0.000000e+00> : vector<1x128xf32>
    %31 = tpu.matmul %29, %28, %cst_24 {dimension_numbers = #tpu.dot_dimension_numbers<[1], [0], [0], [1], [0, 0, 1, 1], [], []>} : vector<1x16xf32>, vector<16x128xf32>, vector<1x128xf32> -> vector<1x128xf32>
    %32 = vector.broadcast %30 : vector<1x1xf32> to vector<1x128xf32>
    %33 = arith.addf %31, %32 : vector<1x128xf32>
    %c0_25 = arith.constant 0 : index
    %c0_26 = arith.constant 0 : index
    %34 = vector.load %arg3[%c0_25, %c0_26] : memref<1x128xf32, #tpu.memory_space<vmem>>, vector<1x128xf32>
    tpu.vector_store %arg3[%c0_25, %c0_26], %33 {strides = array<i32>} : memref<1x128xf32, #tpu.memory_space<vmem>>, vector<1x128xf32>,
    return
  }
  func.func @transform_0(%arg0: i32) -> (i32, i32) {
    %c0_i32 = arith.constant 0 : i32
    %c0_i32_0 = arith.constant 0 : i32
    return %arg0, %c0_i32 : i32, i32
  }
  func.func @transform_1(%arg0: i32) -> (i32, i32) {
    %c0_i32 = arith.constant 0 : i32
    %c0_i32_0 = arith.constant 0 : i32
    %c0_i32_1 = arith.constant 0 : i32
    return %c0_i32, %c0_i32_0 : i32, i32
  }
  func.func @transform_2(%arg0: i32) -> (i32, i32) {
    %c0_i32 = arith.constant 0 : i32
    %c0_i32_0 = arith.constant 0 : i32
    return %c0_i32, %arg0 : i32, i32
  }
}

</mosaic_0001>

<llo_original>
// kernel: mlp_forward.1
$region0: #{mlp_forward.1}
  #allocation0 [shape = 'u32[]', space=smem, size = 0x4, offset = 0x4, fixed_abs, tag = 'smem constant byte address 0x4 - core index']
  #allocation1 [shape = 'u32[72,128]{1,0:T(1,128)}', space=vmem, size = 0x9000, scoped, tag = 'internal scratch']
  %s0 = inlined_call_operand.vmem [shape: f32[128,8], index: 0, kind: input, shape index: {}]
  %s1 = inlined_call_operand.hbm [shape: f32[152,128], index: 1, kind: input, shape index: {}]
  %s2 = inlined_call_operand.vmem [shape: f32[1,128], index: 2, kind: output, shape index: {}]
  %s3 = sld [smem:[#allocation0]]
  $region22: #{mlp_forward.1} parent=0
    _
  %s5 = ssub.s32 1, %s3
  %s6 = scalar_select 0, %s5, %s3
  $region1: #{mlp_forward.1} parent=0
    #allocation2 [shape = 'u8[77824]{0}', space=vmem, size = 0x13000, scoped, tag = 'input window, operand 1, single buffered']
    #allocation3 [shape = 's32[1]{0}', space=sflag, size = 0x4, scoped, tag = 'scoped memory for mlp_forward.1']
    %7 = vsyncpa [#allocation3], 0
    // Predicated region
    $region2: #{mlp_forward.1} parent=1 // pred_check
      _
    $region3: #{mlp_forward.1} parent=1 // pred_check_branch
      %9 = sbr.rel (0) target = $region5
    $region4: #{mlp_forward.1} parent=1 // pred_region
      _
    $region5: #{mlp_forward.1} parent=1 // pred_fallthru
      _
    // Predicated region
    $region6: #{mlp_forward.1} parent=1 // pred_check
      _
    $region7: #{mlp_forward.1} parent=1 // pred_check_branch
      %11 = sbr.rel (0) target = $region9
    $region8: #{mlp_forward.1} parent=1 // pred_region
      %13 = vsyncadd [#allocation3], 0
      %s14 = sshll.u32 %s1, 4
      %s15 = int_to_ptr.hbm [resolvable:$true] %s14
      %s16 = sshll.u32 [#allocation2], 4
      %s17 = int_to_ptr.vmem [resolvable:$true] %s16
      %22 = dma.hbm_to_vmem [thread:$0]  %s15, 2432, %s17, [#allocation3], 128, 128, 8
    $region9: #{mlp_forward.1} parent=1 // pred_fallthru
      _
    // Predicated region
    $region10: #{mlp_forward.1} parent=1 // pred_check
      _
    $region11: #{mlp_forward.1} parent=1 // pred_check_branch
      %24 = sbr.rel (0) target = $region13
    $region12: #{mlp_forward.1} parent=1 // pred_region
      %26 = dma.done [#allocation3], 2432
    $region13: #{mlp_forward.1} parent=1 // pred_fallthru
      _
    %v27 = vld [vmem:[%s0] sm:$0xff]
    %v28 = vld [vmem:[%s0 + $0x8] sm:$0xff]
    %v29 = vld [vmem:[%s0 + $0x10] sm:$0xff]
    %v30 = vld [vmem:[%s0 + $0x18] sm:$0xff]
    %v31 = vld [vmem:[%s0 + $0x20] sm:$0xff]
    %v32 = vld [vmem:[%s0 + $0x28] sm:$0xff]
    %v33 = vld [vmem:[%s0 + $0x30] sm:$0xff]
    %v34 = vld [vmem:[%s0 + $0x38] sm:$0xff]
    %v35 = vld [vmem:[%s0 + $0x40] sm:$0xff]
    %v36 = vld [vmem:[%s0 + $0x48] sm:$0xff]
    %v37 = vld [vmem:[%s0 + $0x50] sm:$0xff]
    %v38 = vld [vmem:[%s0 + $0x58] sm:$0xff]
    %v39 = vld [vmem:[%s0 + $0x60] sm:$0xff]
    %v40 = vld [vmem:[%s0 + $0x68] sm:$0xff]
    %v41 = vld [vmem:[%s0 + $0x70] sm:$0xff]
    %v42 = vld [vmem:[%s0 + $0x78] sm:$0xff]
    %v43 = vld [vmem:[#allocation2] sm:$0xff]
    %v44 = vld [vmem:[#allocation2 + $0x8] sm:$0xff]
    %v45 = vld [vmem:[#allocation2 + $0x10] sm:$0xff]
    %v46 = vld [vmem:[#allocation2 + $0x18] sm:$0xff]
    %v47 = vld [vmem:[#allocation2 + $0x20] sm:$0xff]
    %v48 = vld [vmem:[#allocation2 + $0x28] sm:$0xff]
    %v49 = vld [vmem:[#allocation2 + $0x30] sm:$0xff]
    %v50 = vld [vmem:[#allocation2 + $0x38] sm:$0xff]
    %52 = vset.pattern.permute.xlu0 64
    %53 = vperm.xlu0 %52, %v43
    %v54 = vpop.permute.xlu0 %53
    %57 = vset.pattern.permute.xlu0 64
    %58 = vperm.xlu0 %57, %v44
    %v59 = vpop.permute.xlu0 %58
    %62 = vset.pattern.permute.xlu0 64
    %63 = vperm.xlu0 %62, %v45
    %v64 = vpop.permute.xlu0 %63
    %67 = vset.pattern.permute.xlu0 64
    %68 = vperm.xlu0 %67, %v46
    %v69 = vpop.permute.xlu0 %68
    %72 = vset.pattern.permute.xlu0 64
    %73 = vperm.xlu0 %72, %v47
    %v74 = vpop.permute.xlu0 %73
    %77 = vset.pattern.permute.xlu0 64
    %78 = vperm.xlu0 %77, %v48
    %v79 = vpop.permute.xlu0 %78
    %82 = vset.pattern.permute.xlu0 64
    %83 = vperm.xlu0 %82, %v49
    %v84 = vpop.permute.xlu0 %83
    %87 = vset.pattern.permute.xlu0 64
    %88 = vperm.xlu0 %87, %v50
    %v89 = vpop.permute.xlu0 %88
    %vm91 = vcmask 64512
    %v92 = vsel %vm91, %v43, 0
    %v94 = vsel %vm91, %v44, 0
    %v96 = vsel %vm91, %v45, 0
    %v98 = vsel %vm91, %v46, 0
    %v100 = vsel %vm91, %v47, 0
    %v102 = vsel %vm91, %v48, 0
    %v104 = vsel %vm91, %v49, 0
    %v106 = vsel %vm91, %v50, 0
    %v109 = vsel %vm91, %v27, 0
    %v112 = vsel %vm91, %v28, 0
    %v115 = vsel %vm91, %v29, 0
    %v118 = vsel %vm91, %v30, 0
    %v121 = vsel %vm91, %v31, 0
    %v124 = vsel %vm91, %v32, 0
    %v127 = vsel %vm91, %v33, 0
    %v130 = vsel %vm91, %v34, 0
    %v133 = vsel %vm91, %v35, 0
    %v136 = vsel %vm91, %v36, 0
    %v139 = vsel %vm91, %v37, 0
    %v142 = vsel %vm91, %v38, 0
    %v145 = vsel %vm91, %v39, 0
    %v148 = vsel %vm91, %v40, 0
    %v151 = vsel %vm91, %v41, 0
    %v154 = vsel %vm91, %v42, 0
    %156 = vmatpush.xpose.msra.mxu0 %v154
    %157 = vmatpush.xpose.msra.mxu0 %v151
    %158 = vmatpush.xpose.msra.mxu0 %v148
    %159 = vmatpush.xpose.msra.mxu0 %v145
    %160 = vmatpush.xpose.msra.mxu0 %v142
    %161 = vmatpush.xpose.msra.mxu0 %v139
    %162 = vmatpush.xpose.msra.mxu0 %v136
    %163 = vmatpush.xpose.msra.mxu0 %v133
    %164 = vmatpush.xpose.msra.mxu0 %v130
    %165 = vmatpush.xpose.msra.mxu0 %v127
    %166 = vmatpush.xpose.msra.mxu0 %v124
    %167 = vmatpush.xpose.msra.mxu0 %v121
    %168 = vmatpush.xpose.msra.mxu0 %v118
    %169 = vmatpush.xpose.msra.mxu0 %v115
    %170 = vmatpush.xpose.msra.mxu0 %v112
    %171 = vmatpush.xpose.msra.mxu0 %v109
    %172 = vmatmul.f32.gmra.mxu0 %v92
    %v173 = vpop.f32.mrf.mxu0
    %v174 = vadd.f32 %v54, %v173
    %175 = vmatmul.f32.gmra.mxu0 %v94
    %v176 = vpop.f32.mrf.mxu0
    %v177 = vadd.f32 %v59, %v176
    %178 = vmatmul.f32.gmra.mxu0 %v96
    %v179 = vpop.f32.mrf.mxu0
    %v180 = vadd.f32 %v64, %v179
    %181 = vmatmul.f32.gmra.mxu0 %v98
    %v182 = vpop.f32.mrf.mxu0
    %v183 = vadd.f32 %v69, %v182
    %184 = vmatmul.f32.gmra.mxu0 %v100
    %v185 = vpop.f32.mrf.mxu0
    %v186 = vadd.f32 %v74, %v185
    %187 = vmatmul.f32.gmra.mxu0 %v102
    %v188 = vpop.f32.mrf.mxu0
    %v189 = vadd.f32 %v79, %v188
    %190 = vmatmul.f32.gmra.mxu0 %v104
    %v191 = vpop.f32.mrf.mxu0
    %v192 = vadd.f32 %v84, %v191
    %193 = vmatmul.f32.gmra.mxu0 %v106
    %v194 = vpop.f32.mrf.mxu0
    %v195 = vadd.f32 %v89, %v194
    %196 = vdwg.mxu0
    %v197 = vmax.f32 %v174, 0.0
    %v198 = vmax.f32 %v177, 0.0
    %v199 = vmax.f32 %v180, 0.0
    %v200 = vmax.f32 %v183, 0.0
    %v201 = vmax.f32 %v186, 0.0
    %v202 = vmax.f32 %v189, 0.0
    %v203 = vmax.f32 %v192, 0.0
    %v204 = vmax.f32 %v195, 0.0
    %v205 = vld [vmem:[#allocation2 + $0x40] sm:$0xff]
    %v206 = vld [vmem:[#allocation2 + $0x48] sm:$0xff]
    %v207 = vld [vmem:[#allocation2 + $0x50] sm:$0xff]
    %v208 = vld [vmem:[#allocation2 + $0x58] sm:$0xff]
    %210 = vset.pattern.permute.xlu0 64
    %211 = vperm.xlu0 %210, %v205
    %v212 = vpop.permute.xlu0 %211
    %215 = vset.pattern.permute.xlu0 64
    %216 = vperm.xlu0 %215, %v206
    %v217 = vpop.permute.xlu0 %216
    %220 = vset.pattern.permute.xlu0 64
    %221 = vperm.xlu0 %220, %v207
    %v222 = vpop.permute.xlu0 %221
    %225 = vset.pattern.permute.xlu0 64
    %226 = vperm.xlu0 %225, %v208
    %v227 = vpop.permute.xlu0 %226
    %vm229 = vcmask 523264
    %v230 = vsel %vm229, %v205, 0
    %v232 = vsel %vm229, %v206, 0
    %v234 = vsel %vm229, %v207, 0
    %v236 = vsel %vm229, %v208, 0
    %238 = vmatpush.msra.mxu0 0.0
    %239 = vmatpush.msra.mxu0 0.0
    %240 = vmatpush.msra.mxu0 0.0
    %241 = vmatpush.msra.mxu0 0.0
    %242 = vmatpush.msra.mxu0 0.0
    %243 = vmatpush.msra.mxu0 0.0
    %244 = vmatpush.msra.mxu0 0.0
    %245 = vmatpush.msra.mxu0 0.0
    %246 = vmatpush.msra.mxu0 %v204
    %247 = vmatpush.msra.mxu0 %v203
    %248 = vmatpush.msra.mxu0 %v202
    %249 = vmatpush.msra.mxu0 %v201
    %250 = vmatpush.msra.mxu0 %v200
    %251 = vmatpush.msra.mxu0 %v199
    %252 = vmatpush.msra.mxu0 %v198
    %253 = vmatpush.msra.mxu0 %v197
    %254 = vmatmul.f32.gmra.mxu0 %v230
    %v255 = vpop.f32.mrf.mxu0
    %v256 = vadd.f32 %v212, %v255
    %257 = vmatmul.f32.gmra.mxu0 %v232
    %v258 = vpop.f32.mrf.mxu0
    %v259 = vadd.f32 %v217, %v258
    %260 = vmatmul.f32.gmra.mxu0 %v234
    %v261 = vpop.f32.mrf.mxu0
    %v262 = vadd.f32 %v222, %v261
    %263 = vmatmul.f32.gmra.mxu0 %v236
    %v264 = vpop.f32.mrf.mxu0
    %v265 = vadd.f32 %v227, %v264
    %266 = vdwg.mxu0
    %v267 = vmax.f32 %v256, 0.0
    %v268 = vmax.f32 %v259, 0.0
    %v269 = vmax.f32 %v262, 0.0
    %v270 = vmax.f32 %v265, 0.0
    %v271 = vld [vmem:[#allocation2 + $0x60] sm:$0xff]
    %v272 = vld [vmem:[#allocation2 + $0x68] sm:$0xff]
    %v273 = vld [vmem:[#allocation2 + $0x70] sm:$0xff]
    %v274 = vld [vmem:[#allocation2 + $0x78] sm:$0xff]
    %276 = vset.pattern.permute.xlu0 64
    %277 = vperm.xlu0 %276, %v271
    %v278 = vpop.permute.xlu0 %277
    %281 = vset.pattern.permute.xlu0 64
    %282 = vperm.xlu0 %281, %v272
    %v283 = vpop.permute.xlu0 %282
    %286 = vset.pattern.permute.xlu0 64
    %287 = vperm.xlu0 %286, %v273
    %v288 = vpop.permute.xlu0 %287
    %291 = vset.pattern.permute.xlu0 64
    %292 = vperm.xlu0 %291, %v274
    %v293 = vpop.permute.xlu0 %292
    %vm295 = vcmask 261120
    %v296 = vsel %vm295, %v271, 0
    %v298 = vsel %vm295, %v272, 0
    %v300 = vsel %vm295, %v273, 0
    %v302 = vsel %vm295, %v274, 0
    %304 = vmatpush.msra.mxu0 0.0
    %305 = vmatpush.msra.mxu0 0.0
    %306 = vmatpush.msra.mxu0 0.0
    %307 = vmatpush.msra.mxu0 0.0
    %308 = vmatpush.msra.mxu0 0.0
    %309 = vmatpush.msra.mxu0 0.0
    %310 = vmatpush.msra.mxu0 0.0
    %311 = vmatpush.msra.mxu0 0.0
    %312 = vmatpush.msra.mxu0 0.0
    %313 = vmatpush.msra.mxu0 0.0
    %314 = vmatpush.msra.mxu0 0.0
    %315 = vmatpush.msra.mxu0 0.0
    %316 = vmatpush.msra.mxu0 %v270
    %317 = vmatpush.msra.mxu0 %v269
    %318 = vmatpush.msra.mxu0 %v268
    %319 = vmatpush.msra.mxu0 %v267
    %320 = vmatmul.f32.gmra.mxu0 %v296
    %v321 = vpop.f32.mrf.mxu0
    %v322 = vadd.f32 %v278, %v321
    %323 = vmatmul.f32.gmra.mxu0 %v298
    %v324 = vpop.f32.mrf.mxu0
    %v325 = vadd.f32 %v283, %v324
    %326 = vmatmul.f32.gmra.mxu0 %v300
    %v327 = vpop.f32.mrf.mxu0
    %v328 = vadd.f32 %v288, %v327
    %329 = vmatmul.f32.gmra.mxu0 %v302
    %v330 = vpop.f32.mrf.mxu0
    %v331 = vadd.f32 %v293, %v330
    %332 = vdwg.mxu0
    %v333 = vmax.f32 %v322, 0.0
    %v334 = vmax.f32 %v325, 0.0
    %v335 = vmax.f32 %v328, 0.0
    %v336 = vmax.f32 %v331, 0.0
    %v337 = vld [vmem:[#allocation2 + $0x80] sm:$0xff]
    %v338 = vld [vmem:[#allocation2 + $0x88] sm:$0xff]
    %340 = vset.pattern.permute.xlu0 64
    %341 = vperm.xlu0 %340, %v337
    %v342 = vpop.permute.xlu0 %341
    %345 = vset.pattern.permute.xlu0 64
    %346 = vperm.xlu0 %345, %v338
    %v347 = vpop.permute.xlu0 %346
    %v349 = vsel %vm295, %v337, 0
    %v351 = vsel %vm295, %v338, 0
    %353 = vmatpush.msra.mxu0 0.0
    %354 = vmatpush.msra.mxu0 0.0
    %355 = vmatpush.msra.mxu0 0.0
    %356 = vmatpush.msra.mxu0 0.0
    %357 = vmatpush.msra.mxu0 0.0
    %358 = vmatpush.msra.mxu0 0.0
    %359 = vmatpush.msra.mxu0 0.0
    %360 = vmatpush.msra.mxu0 0.0
    %361 = vmatpush.msra.mxu0 0.0
    %362 = vmatpush.msra.mxu0 0.0
    %363 = vmatpush.msra.mxu0 0.0
    %364 = vmatpush.msra.mxu0 0.0
    %365 = vmatpush.msra.mxu0 %v336
    %366 = vmatpush.msra.mxu0 %v335
    %367 = vmatpush.msra.mxu0 %v334
    %368 = vmatpush.msra.mxu0 %v333
    %369 = vmatmul.f32.gmra.mxu0 %v349
    %v370 = vpop.f32.mrf.mxu0
    %v371 = vadd.f32 %v342, %v370
    %372 = vmatmul.f32.gmra.mxu0 %v351
    %v373 = vpop.f32.mrf.mxu0
    %v374 = vadd.f32 %v347, %v373
    %375 = vdwg.mxu0
    %v376 = vmax.f32 %v371, 0.0
    %v377 = vmax.f32 %v374, 0.0
    %v378 = vld [vmem:[#allocation2 + $0x90] sm:$0x1]
    %380 = vset.pattern.permute.xlu0 64
    %381 = vperm.xlu0 %380, %v378
    %v382 = vpop.permute.xlu0 %381
    %vm384 = vcmask 130048
    %v385 = vsel %vm384, %v378, 0
    %387 = vmatpush.msra.mxu0 0.0
    %388 = vmatpush.msra.mxu0 0.0
    %389 = vmatpush.msra.mxu0 0.0
    %390 = vmatpush.msra.mxu0 0.0
    %391 = vmatpush.msra.mxu0 0.0
    %392 = vmatpush.msra.mxu0 0.0
    %393 = vmatpush.msra.mxu0 0.0
    %394 = vmatpush.msra.mxu0 0.0
    %395 = vmatpush.msra.mxu0 0.0
    %396 = vmatpush.msra.mxu0 0.0
    %397 = vmatpush.msra.mxu0 0.0
    %398 = vmatpush.msra.mxu0 0.0
    %399 = vmatpush.msra.mxu0 0.0
    %400 = vmatpush.msra.mxu0 0.0
    %401 = vmatpush.msra.mxu0 %v377
    %402 = vmatpush.msra.mxu0 %v376
    %403 = vmatmul.f32.gmra.mxu0 %v385
    %v404 = vpop.f32.mrf.mxu0
    %v405 = vadd.f32 %v382, %v404
    %406 = vdwg.mxu0
    %407 = vst [vmem:[%s2] sm:$0x1] %v405
    // Predicated region
    $region14: #{mlp_forward.1} parent=1 // pred_check
      _
    $region15: #{mlp_forward.1} parent=1 // pred_check_branch
      %409 = sbr.rel (0) target = $region17
    $region16: #{mlp_forward.1} parent=1 // pred_region
      _
    $region17: #{mlp_forward.1} parent=1 // pred_fallthru
      _
    // Predicated region
    $region18: #{mlp_forward.1} parent=1 // pred_check
      _
    $region19: #{mlp_forward.1} parent=1 // pred_check_branch
      %411 = sbr.rel (0) target = $region21
    $region20: #{mlp_forward.1} parent=1 // pred_region
      _
    $region21: #{mlp_forward.1} parent=1 // pred_fallthru
      _
    %412 = vsyncpa [#allocation3], 1

</llo_original>
